<compile_context>
chip_gen: v5e
topology: v5e:2x2
jax: 0.10.0
libtpu: 0.0.40
codegen_flags: <defaults>
</compile_context>

<pallas_src>
import jax
import jax.numpy as jnp
from jax.experimental import pallas as pl
from jax.experimental.pallas import tpu as pltpu

_EPS = 1e-8
_LANE = 128
_SUBLANE = 8


def _round_up(x, m):
    return ((x + m - 1) // m) * m


def _device_defaults():
    """(per-input-buffer VMEM byte target, outer grid blocks) per TPU generation."""
    try:
        kind = jax.devices()[0].device_kind.lower()
    except Exception:
        return 4 << 20, 1
    if "v6" in kind:                       # 128 MiB VMEM, 1 TC
        return 8 << 20, 1
    if "v5" in kind:                       # single vst slot, ~0.8 TB/s HBM, 1 TC
        return 3 << 20, 1
    if "v7" in kind or "tpu7" in kind or "7x" in kind:
        return 5 << 20, 2                  # 64 MiB VMEM, 2 TCs -> split the stream
    return 4 << 20, 1


def _make_folded_kernel(n_rows, g_inner, rows_per_block, needs_mask):
    """Inputs reshaped (free) to (B, R, 128); mask trailing rows of the last tile."""

    def kernel(p_ref, t_ref, pt_ref, pp_ref, tt_ref):
        i = pl.program_id(1)

        @pl.when(i == 0)
        def _init():
            pt_ref[...] = jnp.zeros_like(pt_ref)
            pp_ref[...] = jnp.zeros_like(pp_ref)
            tt_ref[...] = jnp.zeros_like(tt_ref)

        p = p_ref[...].astype(jnp.float32)      # (B, rows_per_block, 128)
        t = t_ref[...].astype(jnp.float32)

        if needs_mask:  # static specialization: only emitted when tiling is ragged
            start = (pl.program_id(0) * g_inner + i) * rows_per_block
            row = jax.lax.broadcasted_iota(jnp.int32, p.shape, 1) + start
            valid = row < n_rows
            p = jnp.where(valid, p, 0.0)
            t = jnp.where(valid, t, 0.0)

        # Per-tile sublane reduce -> tiny lane-dense (1, B, 128) accumulators.
        pt_ref[...] += jnp.sum(p * t, axis=1)[None]
        pp_ref[...] += jnp.sum(p * p, axis=1)[None]
        tt_ref[...] += jnp.sum(t * t, axis=1)[None]

    return kernel


def _make_flat_kernel(n_cols, g_inner, cols_per_block, needs_mask):
    """Inputs kept as raw (B, T); mask out-of-range columns of the last tile."""

    def kernel(p_ref, t_ref, pt_ref, pp_ref, tt_ref):
        i = pl.program_id(1)

        @pl.when(i == 0)
        def _init():
            pt_ref[...] = jnp.zeros_like(pt_ref)
            pp_ref[...] = jnp.zeros_like(pp_ref)
            tt_ref[...] = jnp.zeros_like(tt_ref)

        p = p_ref[...].astype(jnp.float32)      # (B, cols_per_block)
        t = t_ref[...].astype(jnp.float32)

        if needs_mask:
            start = (pl.program_id(0) * g_inner + i) * cols_per_block
            col = jax.lax.broadcasted_iota(jnp.int32, p.shape, 1) + start
            valid = col < n_cols
            p = jnp.where(valid, p, 0.0)
            t = jnp.where(valid, t, 0.0)

        # Per-tile lane reduce (XLU tail is free filler) -> (1, B, 1) accumulators.
        pt_ref[...] += jnp.sum(p * t, axis=-1, keepdims=True)[None]
        pp_ref[...] += jnp.sum(p * p, axis=-1, keepdims=True)[None]
        tt_ref[...] += jnp.sum(t * t, axis=-1, keepdims=True)[None]

    return kernel


def sisdr_loss(preds, target, *, block_bytes=None, outer_blocks=None):
    """preds, target: (B, T) float32/bfloat16 -> scalar float32 loss."""
    B, T = preds.shape
    assert target.shape == (B, T)
    assert T >= 1
    itemsize = jnp.dtype(preds.dtype).itemsize

    dflt_bytes, dflt_outer = _device_defaults()
    if block_bytes is None:
        block_bytes = dflt_bytes
    if outer_blocks is None:
        outer_blocks = dflt_outer

    folded = (T % _LANE == 0)

    if folded:
        # Free (contiguous) reshape: fold time into sublanes -> dense vregs for any B.
        R = T // _LANE
        if R <= _SUBLANE:
            rows = R                        # full-extent block (always legal)
        else:
            rows = max(_SUBLANE,
                       (block_bytes // (B * _LANE * itemsize)) // _SUBLANE * _SUBLANE)
            rows = min(rows, (R // _SUBLANE) * _SUBLANE)
        n_tiles = pl.cdiv(R, rows)
        g_outer = outer_blocks if (outer_blocks > 1 and n_tiles % outer_blocks == 0) else 1
        g_inner = n_tiles // g_outer
        needs_mask = (n_tiles * rows != R)

        p_in = preds.reshape(B, R, _LANE)
        t_in = target.reshape(B, R, _LANE)
        in_block = (B, rows, _LANE)
        in_map = lambda o, i: (0, o * g_inner + i, 0)
        out_lanes = _LANE
        kernel = _make_folded_kernel(R, g_inner, rows, needs_mask)
        block_vmem = B * rows * _LANE * itemsize
    else:
        # Raw (B, T) pass: no pad, no slice, no extra HBM traffic.
        # TODO(synk): for very large B, add a batch grid axis so per-row DMA chunks
        # stay large instead of shrinking the time tile.
        B_pad = _round_up(B, _SUBLANE)      # VMEM sublane padding for small B
        if T <= _LANE:
            cols = T                        # full-extent block (always legal)
        else:
            cols = max(_LANE, (block_bytes // (B_pad * itemsize)) // _LANE * _LANE)
            cols = min(cols, (T // _LANE) * _LANE)
        n_tiles = pl.cdiv(T, cols)
        g_outer = outer_blocks if (outer_blocks > 1 and n_tiles % outer_blocks == 0) else 1
        g_inner = n_tiles // g_outer
        needs_mask = (n_tiles * cols != T)

        p_in, t_in = preds, target
        in_block = (B, cols)
        in_map = lambda o, i: (0, o * g_inner + i)
        out_lanes = 1
        kernel = _make_flat_kernel(T, g_inner, cols, needs_mask)
        block_vmem = B_pad * cols * itemsize

    # 2 inputs x 2 pipeline buffers + headroom for compiler temporaries; outputs tiny.
    vmem_limit = int(min(64 << 20, max(32 << 20, 4 * block_vmem + (16 << 20))))

    part_shape = jax.ShapeDtypeStruct((g_outer, B, out_lanes), jnp.float32)
    part_spec = pl.BlockSpec((1, B, out_lanes), lambda o, i: (o, 0, 0))

    cost = pl.CostEstimate(
        flops=8 * B * T,
        transcendentals=0,
        bytes_accessed=2 * B * T * itemsize + 3 * g_outer * B * out_lanes * 4,
    )

    p_pt, p_pp, p_tt = pl.pallas_call(
        kernel,
        out_shape=(part_shape, part_shape, part_shape),
        grid_spec=pltpu.PrefetchScalarGridSpec(
            num_scalar_prefetch=0,
            grid=(g_outer, g_inner),
            in_specs=[pl.BlockSpec(in_block, in_map),
                      pl.BlockSpec(in_block, in_map)],
            out_specs=[part_spec, part_spec, part_spec],
        ),
        compiler_params=pltpu.CompilerParams(
            dimension_semantics=("parallel", "arbitrary"),
            vmem_limit_bytes=vmem_limit,
        ),
        cost_estimate=cost,
    )(p_in, t_in)

    # ---- O(B) finalization on the tiny partial sums -------------------------
    s_pt = jnp.sum(p_pt, axis=(0, 2))   # (B,)  sum(preds * target)
    s_pp = jnp.sum(p_pp, axis=(0, 2))   # (B,)  sum(preds^2)
    s_tt = jnp.sum(p_tt, axis=(0, 2))   # (B,)  sum(target^2)

    a = (s_pt + _EPS) / (s_pp + _EPS)
    sss = a * a * s_pp + _EPS
    # identity: sum((target - a*preds)^2) = s_tt - 2a*s_pt + a^2*s_pp
    # (clamped; can lose precision only when target ~= a*preds, i.e. very high SDR)
    snn = jnp.maximum(s_tt - 2.0 * a * s_pt + a * a * s_pp, 0.0) + _EPS
    sdr = 10.0 * jnp.log10(sss / snn)
    return -jnp.mean(sdr) / 20.0


def _reference_loss(preds, target, eps=_EPS):
    # Pure-JAX transcription of the PyTorch forward pass (materializes
    # e_true / e_res exactly like the original si_sdr).
    ref = preds[:, None, :].astype(jnp.float32)
    est = target[:, None, :].astype(jnp.float32)
    num = jnp.sum(ref * est, axis=-1, keepdims=True) + eps
    den = jnp.sum(ref * ref, axis=-1, keepdims=True) + eps
    a = num / den
    e_true = a * ref
    e_res = est - e_true
    sss = jnp.sum(e_true ** 2, axis=-1) + eps
    snn = jnp.sum(e_res ** 2, axis=-1) + eps
    sdr = 10.0 * jnp.log10(sss / snn)
    return -jnp.mean(sdr) / 20.0


if __name__ == "__main__":
    key = jax.random.PRNGKey(0)
    ks = jax.random.split(key, 8)

    loss_fn = jax.jit(sisdr_loss, static_argnames=("block_bytes", "outer_blocks"))

    def _check(preds, target, rtol=1e-4, atol=1e-5, **kw):
        out = jax.block_until_ready(loss_fn(preds, target, **kw))
        ref = _reference_loss(preds, target)
        assert jnp.allclose(out, ref, rtol=rtol, atol=atol), (out, ref, kw)
        return out

    # 1) Ragged T (not a multiple of 128): flat kernel + in-kernel column mask,
    #    device-tuned default tiling.
    p1 = jax.random.normal(ks[0], (2, 4000), dtype=jnp.float32)
    t1 = jax.random.normal(ks[1], (2, 4000), dtype=jnp.float32)
    _check(p1, t1)

    # 2) Same data, forced multi-tile grid (2 x 2) with a parallel outer split.
    _check(p1, t1, block_bytes=32 * 1024, outer_blocks=2)

    # 3) T divisible by 128: free reshape -> sublane-folded kernel (R=4, single tile).
    p3 = jax.random.normal(ks[2], (3, 512), dtype=jnp.float32)
    t3 = jax.random.normal(ks[3], (3, 512), dtype=jnp.float32)
    _check(p3, t3)

    # 4) Folded kernel, multi-tile grid with exact tiling (no mask) and outer split.
    p4 = jax.random.normal(ks[4], (2, 48 * 128), dtype=jnp.float32)
    t4 = jax.random.normal(ks[5], (2, 48 * 128), dtype=jnp.float32)
    _check(p4, t4, block_bytes=2 * 8 * 128 * 4, outer_blocks=2)

    # 5) bf16 inputs (dtype-aware tile sizing; f32 accumulation in the kernel).
    p5 = jax.random.normal(ks[6], (4, 4000), dtype=jnp.bfloat16)
    t5 = jax.random.normal(ks[7], (4, 4000), dtype=jnp.bfloat16)
    _check(p5, t5, rtol=2e-3, atol=1e-4)

    print("KERNEL_OK")
</pallas_src>

<mosaic_0001>
module attributes {stable_mosaic.version = 11 : i64} {
  func.func @kernel(%arg0: i32, %arg1: i32, %arg2: memref<2x3968xf32, #tpu.memory_space<vmem>>, %arg3: memref<2x3968xf32, #tpu.memory_space<vmem>>, %arg4: memref<1x2x1xf32, #tpu.memory_space<vmem>>, %arg5: memref<1x2x1xf32, #tpu.memory_space<vmem>>, %arg6: memref<1x2x1xf32, #tpu.memory_space<vmem>>) attributes {dimension_semantics = [#tpu.dimension_semantics<parallel>, #tpu.dimension_semantics<arbitrary>], iteration_bounds = array<i64: 1, 2>, scalar_prefetch = 0 : i64, scratch_operands = 0 : i64, tpu.core_type = #tpu.core_type<tc>, window_params = [{transform_indices = @transform_0, window_bounds = array<i64: 2, 3968>}, {transform_indices = @transform_1, window_bounds = array<i64: 2, 3968>}, {transform_indices = @transform_2, window_bounds = array<i64: 1, 2, 1>}, {transform_indices = @transform_3, window_bounds = array<i64: 1, 2, 1>}, {transform_indices = @transform_4, window_bounds = array<i64: 1, 2, 1>}]} {
    %c0_i32 = arith.constant 0 : i32
    %0 = arith.cmpi eq, %arg1, %c0_i32 : i32
    %1 = arith.extui %0 : i1 to i32
    %c0_i32_0 = arith.constant 0 : i32
    %2 = arith.cmpi ne, %1, %c0_i32_0 : i32
    scf.if %2 {
      %cst_26 = arith.constant 0.000000e+00 : f32
      %38 = vector.broadcast %cst_26 : f32 to vector<1x2x1xf32>
      %c0_27 = arith.constant 0 : index
      %c0_28 = arith.constant 0 : index
      %c0_29 = arith.constant 0 : index
      %39 = vector.load %arg4[%c0_27, %c0_28, %c0_29] : memref<1x2x1xf32, #tpu.memory_space<vmem>>, vector<1x2x1xf32>
      tpu.vector_store %arg4[%c0_27, %c0_28, %c0_29], %38 {strides = array<i32>} : memref<1x2x1xf32, #tpu.memory_space<vmem>>, vector<1x2x1xf32>,
      %cst_30 = arith.constant 0.000000e+00 : f32
      %40 = vector.broadcast %cst_30 : f32 to vector<1x2x1xf32>
      %c0_31 = arith.constant 0 : index
      %c0_32 = arith.constant 0 : index
      %c0_33 = arith.constant 0 : index
      %41 = vector.load %arg5[%c0_31, %c0_32, %c0_33] : memref<1x2x1xf32, #tpu.memory_space<vmem>>, vector<1x2x1xf32>
      tpu.vector_store %arg5[%c0_31, %c0_32, %c0_33], %40 {strides = array<i32>} : memref<1x2x1xf32, #tpu.memory_space<vmem>>, vector<1x2x1xf32>,
      %cst_34 = arith.constant 0.000000e+00 : f32
      %42 = vector.broadcast %cst_34 : f32 to vector<1x2x1xf32>
      %c0_35 = arith.constant 0 : index
      %c0_36 = arith.constant 0 : index
      %c0_37 = arith.constant 0 : index
      %43 = vector.load %arg6[%c0_35, %c0_36, %c0_37] : memref<1x2x1xf32, #tpu.memory_space<vmem>>, vector<1x2x1xf32>
      tpu.vector_store %arg6[%c0_35, %c0_36, %c0_37], %42 {strides = array<i32>} : memref<1x2x1xf32, #tpu.memory_space<vmem>>, vector<1x2x1xf32>,
    } else {
    }
    %c0 = arith.constant 0 : index
    %c0_1 = arith.constant 0 : index
    %3 = vector.load %arg2[%c0, %c0_1] : memref<2x3968xf32, #tpu.memory_space<vmem>>, vector<2x3968xf32>
    %c0_2 = arith.constant 0 : index
    %c0_3 = arith.constant 0 : index
    %4 = vector.load %arg3[%c0_2, %c0_3] : memref<2x3968xf32, #tpu.memory_space<vmem>>, vector<2x3968xf32>
    %c2_i32 = arith.constant 2 : i32
    %5 = arith.muli %arg0, %c2_i32 : i32
    %6 = arith.addi %5, %arg1 : i32
    %c3968_i32 = arith.constant 3968 : i32
    %7 = arith.muli %6, %c3968_i32 : i32
    %8 = tpu.iota {dimensions = array<i32: 1>} : vector<2x3968xi32>
    %9 = vector.broadcast %7 : i32 to vector<2x3968xi32>
    %10 = arith.addi %8, %9 : vector<2x3968xi32>
    %c4000_i32 = arith.constant 4000 : i32
    %11 = vector.broadcast %c4000_i32 : i32 to vector<2x3968xi32>
    %12 = arith.cmpi slt, %10, %11 : vector<2x3968xi32>
    %cst = arith.constant 0.000000e+00 : f32
    %13 = vector.broadcast %cst : f32 to vector<2x3968xf32>
    %14 = arith.select %12, %3, %13 : vector<2x3968xi1>, vector<2x3968xf32>
    %cst_4 = arith.constant 0.000000e+00 : f32
    %15 = vector.broadcast %cst_4 : f32 to vector<2x3968xf32>
    %16 = arith.select %12, %4, %15 : vector<2x3968xi1>, vector<2x3968xf32>
    %c0_5 = arith.constant 0 : index
    %c0_6 = arith.constant 0 : index
    %c0_7 = arith.constant 0 : index
    %17 = vector.load %arg4[%c0_5, %c0_6, %c0_7] : memref<1x2x1xf32, #tpu.memory_space<vmem>>, vector<1x2x1xf32>
    %18 = arith.mulf %14, %16 : vector<2x3968xf32>
    %cst_8 = arith.constant dense<0.000000e+00> : vector<2xf32>
    %19 = vector.multi_reduction <add>, %18, %cst_8 [1] : vector<2x3968xf32> to vector<2xf32>
    %20 = vector.shape_cast %19 : vector<2xf32> to vector<2x1xf32>
    %21 = vector.shape_cast %20 : vector<2x1xf32> to vector<1x2x1xf32>
    %22 = arith.addf %17, %21 : vector<1x2x1xf32>
    %c0_9 = arith.constant 0 : index
    %c0_10 = arith.constant 0 : index
    %c0_11 = arith.constant 0 : index
    %23 = vector.load %arg4[%c0_9, %c0_10, %c0_11] : memref<1x2x1xf32, #tpu.memory_space<vmem>>, vector<1x2x1xf32>
    tpu.vector_store %arg4[%c0_9, %c0_10, %c0_11], %22 {strides = array<i32>} : memref<1x2x1xf32, #tpu.memory_space<vmem>>, vector<1x2x1xf32>,
    %c0_12 = arith.constant 0 : index
    %c0_13 = arith.constant 0 : index
    %c0_14 = arith.constant 0 : index
    %24 = vector.load %arg5[%c0_12, %c0_13, %c0_14] : memref<1x2x1xf32, #tpu.memory_space<vmem>>, vector<1x2x1xf32>
    %25 = arith.mulf %14, %14 : vector<2x3968xf32>
    %cst_15 = arith.constant dense<0.000000e+00> : vector<2xf32>
    %26 = vector.multi_reduction <add>, %25, %cst_15 [1] : vector<2x3968xf32> to vector<2xf32>
    %27 = vector.shape_cast %26 : vector<2xf32> to vector<2x1xf32>
    %28 = vector.shape_cast %27 : vector<2x1xf32> to vector<1x2x1xf32>
    %29 = arith.addf %24, %28 : vector<1x2x1xf32>
    %c0_16 = arith.constant 0 : index
    %c0_17 = arith.constant 0 : index
    %c0_18 = arith.constant 0 : index
    %30 = vector.load %arg5[%c0_16, %c0_17, %c0_18] : memref<1x2x1xf32, #tpu.memory_space<vmem>>, vector<1x2x1xf32>
    tpu.vector_store %arg5[%c0_16, %c0_17, %c0_18], %29 {strides = array<i32>} : memref<1x2x1xf32, #tpu.memory_space<vmem>>, vector<1x2x1xf32>,
    %c0_19 = arith.constant 0 : index
    %c0_20 = arith.constant 0 : index
    %c0_21 = arith.constant 0 : index
    %31 = vector.load %arg6[%c0_19, %c0_20, %c0_21] : memref<1x2x1xf32, #tpu.memory_space<vmem>>, vector<1x2x1xf32>
    %32 = arith.mulf %16, %16 : vector<2x3968xf32>
    %cst_22 = arith.constant dense<0.000000e+00> : vector<2xf32>
    %33 = vector.multi_reduction <add>, %32, %cst_22 [1] : vector<2x3968xf32> to vector<2xf32>
    %34 = vector.shape_cast %33 : vector<2xf32> to vector<2x1xf32>
    %35 = vector.shape_cast %34 : vector<2x1xf32> to vector<1x2x1xf32>
    %36 = arith.addf %31, %35 : vector<1x2x1xf32>
    %c0_23 = arith.constant 0 : index
    %c0_24 = arith.constant 0 : index
    %c0_25 = arith.constant 0 : index
    %37 = vector.load %arg6[%c0_23, %c0_24, %c0_25] : memref<1x2x1xf32, #tpu.memory_space<vmem>>, vector<1x2x1xf32>
    tpu.vector_store %arg6[%c0_23, %c0_24, %c0_25], %36 {strides = array<i32>} : memref<1x2x1xf32, #tpu.memory_space<vmem>>, vector<1x2x1xf32>,
    return
  }
  func.func @transform_0(%arg0: i32, %arg1: i32) -> (i32, i32) {
    %c2_i32 = arith.constant 2 : i32
    %0 = arith.muli %arg0, %c2_i32 : i32
    %1 = arith.addi %0, %arg1 : i32
    %c0_i32 = arith.constant 0 : i32
    %c0_i32_0 = arith.constant 0 : i32
    return %c0_i32, %1 : i32, i32
  }
  func.func @transform_1(%arg0: i32, %arg1: i32) -> (i32, i32) {
    %c2_i32 = arith.constant 2 : i32
    %0 = arith.muli %arg0, %c2_i32 : i32
    %1 = arith.addi %0, %arg1 : i32
    %c0_i32 = arith.constant 0 : i32
    %c0_i32_0 = arith.constant 0 : i32
    return %c0_i32, %1 : i32, i32
  }
  func.func @transform_2(%arg0: i32, %arg1: i32) -> (i32, i32, i32) {
    %c0_i32 = arith.constant 0 : i32
    %c0_i32_0 = arith.constant 0 : i32
    %c0_i32_1 = arith.constant 0 : i32
    return %arg0, %c0_i32, %c0_i32_0 : i32, i32, i32
  }
  func.func @transform_3(%arg0: i32, %arg1: i32) -> (i32, i32, i32) {
    %c0_i32 = arith.constant 0 : i32
    %c0_i32_0 = arith.constant 0 : i32
    %c0_i32_1 = arith.constant 0 : i32
    return %arg0, %c0_i32, %c0_i32_0 : i32, i32, i32
  }
  func.func @transform_4(%arg0: i32, %arg1: i32) -> (i32, i32, i32) {
    %c0_i32 = arith.constant 0 : i32
    %c0_i32_0 = arith.constant 0 : i32
    %c0_i32_1 = arith.constant 0 : i32
    return %arg0, %c0_i32, %c0_i32_0 : i32, i32, i32
  }
}

</mosaic_0001>

<llo_original>
// kernel: sisdr_loss.1
$region0: #{sisdr_loss.1}
  #allocation0 [shape = 'u32[]', space=smem, size = 0x4, offset = 0x4, fixed_abs, tag = 'smem constant byte address 0x4 - core index']
  #allocation1 [shape = 'u32[72,128]{1,0:T(1,128)}', space=vmem, size = 0x9000, scoped, tag = 'internal scratch']
  %s0 = inlined_call_operand.hbm [shape: f32[2,4000], index: 0, kind: input, shape index: {}]
  %s1 = inlined_call_operand.hbm [shape: f32[2,4000], index: 1, kind: input, shape index: {}]
  %s2 = inlined_call_operand.vmem [shape: f32[1,2,1], index: 2, kind: output, shape index: {0}]
  %s3 = inlined_call_operand.vmem [shape: f32[1,2,1], index: 3, kind: output, shape index: {1}]
  %s4 = inlined_call_operand.vmem [shape: f32[1,2,1], index: 4, kind: output, shape index: {2}]
  %5 = xla_tuple %s2, %s3, %s4
  %s6 = sld [smem:[#allocation0]]
  $region69: #{sisdr_loss.1} parent=0
    _
  %s8 = ssub.s32 1, %s6
  %s9 = scalar_select 0, %s8, %s6
  $region1: #{sisdr_loss.1} parent=0
    #allocation2 [shape = 'u8[63488]{0}', space=vmem, size = 0xf800, scoped, tag = 'input window, operand 0']
    #allocation3 [shape = 's32[2]{0}', space=sflag, size = 0x8, scoped, tag = 'scoped memory for sisdr_loss.1']
    #allocation4 [shape = 'u8[63488]{0}', space=vmem, size = 0xf800, scoped, tag = 'input window, operand 1']
    #allocation5 [shape = 's32[2]{0}', space=sflag, size = 0x8, scoped, tag = 'scoped memory for sisdr_loss.1']
    %10 = vsyncpa [#allocation3], 0
    %s11 = scalar_lea.sflag [#allocation3], 1
    %12 = vsyncpa %s11, 0
    %13 = vsyncpa [#allocation5], 0
    %s14 = scalar_lea.sflag [#allocation5], 1
    %15 = vsyncpa %s14, 0
    loop: start=0, step=1, limit=4
    $region2: #{sisdr_loss.1} parent=1 // loop_pre_header
      _
    $region3: #{sisdr_loss.1} parent=1 // loop_header
      %s17 = sphi 0, %s21
      %p18 = scmp.ge.s32.totalorder %s17, 4
      %s24 = sphi 0, %s36
      %s25 = sphi 0, %s32
      %s26 = sphi 0, %s24
      %s27 = sphi 0, %s25
      %s28 = sphi 0, %s26
      %s29 = sphi 0, %s27
      %s43 = sphi 0, %s45
      %s46 = sphi 0, %s43
      %s47 = sphi 0, %s46
      %s63 = sphi 0, %s47
      %s73 = sphi 0, %s75
      %s76 = sphi 0, %s73
      %s77 = sphi 0, %s76
      %s93 = sphi 0, %s77
      %s99 = sphi 0, %s101
      %s102 = sphi 0, %s99
      %s103 = sphi 0, %s102
      %s119 = sphi 0, %s103
      %s125 = sphi 0, %s127
      %s128 = sphi 0, %s125
      %s129 = sphi 0, %s128
      %s145 = sphi 0, %s129
      %s151 = sphi 0, %s153
      %s154 = sphi 0, %s151
      %s155 = sphi 0, %s154
      %s171 = sphi 0, %s155
    $region4: #{sisdr_loss.1} parent=1 // loop_header_branch
      %20 = sbr.rel (%p18) target = $region8
    $region5: #{sisdr_loss.1} parent=1 // loop_body
      %s22 = ssub.s32 %s17, 1
      %s23 = ssub.s32 %s17, 2
      %s30 = sadd.s32 1, %s25
      %p31 = scmp.ge.s32.totalorder %s30, 2
      %s32 = scalar_select %p31, 0, %s30
      %s33 = sadd.s32 1, %s24
      %s34 = scalar_select %p31, %s33, %s24
      %p35 = scmp.ge.s32.totalorder %s34, 1
      %s36 = scalar_select %p35, 0, %s34
      %s37 = smul.u32 %s24, 2
      %s38 = sadd.s32 %s37, %s25
      %s39 = smul.u32 %s36, 2
      %s40 = sadd.s32 %s39, %s32
      %s41 = ssub.s32 %s38, %s40
      %p42 = scmp.eq.s32.totalorder %s41, 0
      %s44 = sadd.s32 %s43, 1
      %s45 = scalar_select %p42, %s43, %s44
      %p48 = pneg %p42
      %p49 = scmp.eq.s32.totalorder %s17, 1
      %p50 = por %p48, %p49
      %p51 = scmp.ne.s32.totalorder %s43, %s46
      %p52 = scmp.eq.s32.totalorder %s17, 0
      %p53 = por %p51, %p52
      %p54 = scmp.ne.s32.totalorder %s43, %s46
      %p55 = scmp.eq.s32.totalorder %s22, 1
      %p56 = por %p54, %p55
      %p57 = scmp.ne.s32.totalorder %s46, %s47
      %p58 = scmp.eq.s32.totalorder %s22, 0
      %p59 = por %p57, %p58
      %p60 = scmp.ne.s32.totalorder %s46, %s47
      %p61 = scmp.eq.s32.totalorder %s23, 1
      %p62 = por %p60, %p61
      %p64 = scmp.ne.s32.totalorder %s47, %s63
      %p65 = scmp.eq.s32.totalorder %s23, 0
      %p66 = por %p64, %p65
      %s67 = smul.u32 %s24, 2
      %s68 = sadd.s32 %s67, %s25
      %s69 = smul.u32 %s36, 2
      %s70 = sadd.s32 %s69, %s32
      %s71 = ssub.s32 %s68, %s70
      %p72 = scmp.eq.s32.totalorder %s71, 0
      %s74 = sadd.s32 %s73, 1
      %s75 = scalar_select %p72, %s73, %s74
      %p78 = pneg %p72
      %p79 = scmp.eq.s32.totalorder %s17, 1
      %p80 = por %p78, %p79
      %p81 = scmp.ne.s32.totalorder %s73, %s76
      %p82 = scmp.eq.s32.totalorder %s17, 0
      %p83 = por %p81, %p82
      %p84 = scmp.ne.s32.totalorder %s73, %s76
      %p85 = scmp.eq.s32.totalorder %s22, 1
      %p86 = por %p84, %p85
      %p87 = scmp.ne.s32.totalorder %s76, %s77
      %p88 = scmp.eq.s32.totalorder %s22, 0
      %p89 = por %p87, %p88
      %p90 = scmp.ne.s32.totalorder %s76, %s77
      %p91 = scmp.eq.s32.totalorder %s23, 1
      %p92 = por %p90, %p91
      %p94 = scmp.ne.s32.totalorder %s77, %s93
      %p95 = scmp.eq.s32.totalorder %s23, 0
      %p96 = por %p94, %p95
      %s97 = ssub.s32 %s24, %s36
      %p98 = scmp.eq.s32.totalorder %s97, 0
      %s100 = sadd.s32 %s99, 1
      %s101 = scalar_select %p98, %s99, %s100
      %p104 = pneg %p98
      %p105 = scmp.eq.s32.totalorder %s17, 1
      %p106 = por %p104, %p105
      %p107 = scmp.ne.s32.totalorder %s99, %s102
      %p108 = scmp.eq.s32.totalorder %s17, 0
      %p109 = por %p107, %p108
      %p110 = scmp.ne.s32.totalorder %s99, %s102
      %p111 = scmp.eq.s32.totalorder %s22, 1
      %p112 = por %p110, %p111
      %p113 = scmp.ne.s32.totalorder %s102, %s103
      %p114 = scmp.eq.s32.totalorder %s22, 0
      %p115 = por %p113, %p114
      %p116 = scmp.ne.s32.totalorder %s102, %s103
      %p117 = scmp.eq.s32.totalorder %s23, 1
      %p118 = por %p116, %p117
      %p120 = scmp.ne.s32.totalorder %s103, %s119
      %p121 = scmp.eq.s32.totalorder %s23, 0
      %p122 = por %p120, %p121
      %s123 = ssub.s32 %s24, %s36
      %p124 = scmp.eq.s32.totalorder %s123, 0
      %s126 = sadd.s32 %s125, 1
      %s127 = scalar_select %p124, %s125, %s126
      %p130 = pneg %p124
      %p131 = scmp.eq.s32.totalorder %s17, 1
      %p132 = por %p130, %p131
      %p133 = scmp.ne.s32.totalorder %s125, %s128
      %p134 = scmp.eq.s32.totalorder %s17, 0
      %p135 = por %p133, %p134
      %p136 = scmp.ne.s32.totalorder %s125, %s128
      %p137 = scmp.eq.s32.totalorder %s22, 1
      %p138 = por %p136, %p137
      %p139 = scmp.ne.s32.totalorder %s128, %s129
      %p140 = scmp.eq.s32.totalorder %s22, 0
      %p141 = por %p139, %p140
      %p142 = scmp.ne.s32.totalorder %s128, %s129
      %p143 = scmp.eq.s32.totalorder %s23, 1
      %p144 = por %p142, %p143
      %p146 = scmp.ne.s32.totalorder %s129, %s145
      %p147 = scmp.eq.s32.totalorder %s23, 0
      %p148 = por %p146, %p147
      %s149 = ssub.s32 %s24, %s36
      %p150 = scmp.eq.s32.totalorder %s149, 0
      %s152 = sadd.s32 %s151, 1
      %s153 = scalar_select %p150, %s151, %s152
      %p156 = pneg %p150
      %p157 = scmp.eq.s32.totalorder %s17, 1
      %p158 = por %p156, %p157
      %p159 = scmp.ne.s32.totalorder %s151, %s154
      %p160 = scmp.eq.s32.totalorder %s17, 0
      %p161 = por %p159, %p160
      %p162 = scmp.ne.s32.totalorder %s151, %s154
      %p163 = scmp.eq.s32.totalorder %s22, 1
      %p164 = por %p162, %p163
      %p165 = scmp.ne.s32.totalorder %s154, %s155
      %p166 = scmp.eq.s32.totalorder %s22, 0
      %p167 = por %p165, %p166
      %p168 = scmp.ne.s32.totalorder %s154, %s155
      %p169 = scmp.eq.s32.totalorder %s23, 1
      %p170 = por %p168, %p169
      %p172 = scmp.ne.s32.totalorder %s155, %s171
      %p173 = scmp.eq.s32.totalorder %s23, 0
      %p174 = por %p172, %p173
      %p175 = scmp.le.s32.totalorder 1, %s17
      %p176 = scmp.lt.s32.totalorder %s17, 3
      %p177 = pnand %p175, %p176
      %p178 = pneg %p177
      // Predicated region
      $region9: #{sisdr_loss.1} parent=5 // pred_check
        _
      $region10: #{sisdr_loss.1} parent=5 // pred_check_branch
        %180 = sbr.rel (%p177) target = $region12
      $region11: #{sisdr_loss.1} parent=5 // pred_region
        %s181 = ssub.s32 %s17, 1
      $region12: #{sisdr_loss.1} parent=5 // pred_fallthru
        _
      %p182 = scmp.lt.s32.totalorder %s17, 2
      // Predicated region
      $region13: #{sisdr_loss.1} parent=5 // pred_check
        %p183 = pneg %p182
      $region14: #{sisdr_loss.1} parent=5 // pred_check_branch
        %185 = sbr.rel (%p183) target = $region16
      $region15: #{sisdr_loss.1} parent=5 // pred_region
        // Predicated region
        $region17: #{sisdr_loss.1} parent=15 // pred_check
          %p186 = pneg %p53
        $region18: #{sisdr_loss.1} parent=15 // pred_check_branch
          %188 = sbr.rel (%p186) target = $region20
        $region19: #{sisdr_loss.1} parent=15 // pred_region
          %s189 = sand.u32 %s43, 1
          %s190 = scalar_lea.sflag [#allocation3], %s189
          %s191 = sand.u32 %s43, 1
          %s192 = smul.addr %s191, 62
          %s193 = scalar_lea.vmem [#allocation2], %s192
          %s194 = smul.u32 %s24, 2
          %s195 = sadd.s32 %s194, %s25
          %s196 = smul.u32 31, %s195
          %s197 = ssub.s32 32, %s196
          %p198 = scmp.lt.s32.totalorder %s197, 31
          %s199 = scalar_select %p198, %s197, 31
          %s200 = smul.u32 2, %s199
          %s201 = ssub.s32 62, %s200
          %s202 = sshll.u32 %s201, 4
          %203 = vsyncadd %s190, %s202
          %p204 = scmp.ne.s32.totalorder 0, %s200
          %s205 = smul.addr %s196, 2
          %s206 = scalar_lea.hbm %s0, %s205
          %s207 = smul.u32 %s199, 2
          %s208 = sshll.u32 %s207, 4
          %s209 = sshll.u32 %s206, 4
          %s210 = int_to_ptr.hbm [resolvable:$true] %s209
          %s211 = sshll.u32 %s193, 4
          %s212 = int_to_ptr.vmem [resolvable:$true] %s211
          %214 = dma.hbm_to_vmem [thread:$0]  (%p204), %s210, %s208, %s212, %s190
        $region20: #{sisdr_loss.1} parent=15 // pred_fallthru
          _
        // Predicated region
        $region21: #{sisdr_loss.1} parent=15 // pred_check
          %p215 = pneg %p83
        $region22: #{sisdr_loss.1} parent=15 // pred_check_branch
          %217 = sbr.rel (%p215) target = $region24
        $region23: #{sisdr_loss.1} parent=15 // pred_region
          %s218 = sand.u32 %s73, 1
          %s219 = scalar_lea.sflag [#allocation5], %s218
          %s220 = sand.u32 %s73, 1
          %s221 = smul.addr %s220, 62
          %s222 = scalar_lea.vmem [#allocation4], %s221
          %s223 = smul.u32 %s24, 2
          %s224 = sadd.s32 %s223, %s25
          %s225 = smul.u32 31, %s224
          %s226 = ssub.s32 32, %s225
          %p227 = scmp.lt.s32.totalorder %s226, 31
          %s228 = scalar_select %p227, %s226, 31
          %s229 = smul.u32 2, %s228
          %s230 = ssub.s32 62, %s229
          %s231 = sshll.u32 %s230, 4
          %232 = vsyncadd %s219, %s231
          %p233 = scmp.ne.s32.totalorder 0, %s229
          %s234 = smul.addr %s225, 2
          %s235 = scalar_lea.hbm %s1, %s234
          %s236 = smul.u32 %s228, 2
          %s237 = sshll.u32 %s236, 4
          %s238 = sshll.u32 %s235, 4
          %s239 = int_to_ptr.hbm [resolvable:$true] %s238
          %s240 = sshll.u32 %s222, 4
          %s241 = int_to_ptr.vmem [resolvable:$true] %s240
          %243 = dma.hbm_to_vmem [thread:$0]  (%p233), %s239, %s237, %s241, %s219
        $region24: #{sisdr_loss.1} parent=15 // pred_fallthru
          _
      $region16: #{sisdr_loss.1} parent=5 // pred_fallthru
        _
      %p244 = scmp.le.s32.totalorder 1, %s17
      %p245 = scmp.lt.s32.totalorder %s17, 3
      %p246 = pnand %p244, %p245
      %p247 = pneg %p246
      // Predicated region
      $region25: #{sisdr_loss.1} parent=5 // pred_check
        _
      $region26: #{sisdr_loss.1} parent=5 // pred_check_branch
        %249 = sbr.rel (%p246) target = $region28
      $region27: #{sisdr_loss.1} parent=5 // pred_region
        %s250 = ssub.s32 %s17, 1
        %s251 = sand.u32 %s46, 1
        %s252 = scalar_lea.sflag [#allocation3], %s251
        %s253 = sand.u32 %s46, 1
        %s254 = smul.addr %s253, 62
        %s255 = scalar_lea.vmem [#allocation2], %s254
        // Predicated region
        $region29: #{sisdr_loss.1} parent=27 // pred_check
          %p256 = pneg %p59
        $region30: #{sisdr_loss.1} parent=27 // pred_check_branch
          %258 = sbr.rel (%p256) target = $region32
        $region31: #{sisdr_loss.1} parent=27 // pred_region
          %260 = dma.done %s252, 992
        $region32: #{sisdr_loss.1} parent=27 // pred_fallthru
          _
        %s261 = sand.u32 %s76, 1
        %s262 = scalar_lea.sflag [#allocation5], %s261
        %s263 = sand.u32 %s76, 1
        %s264 = smul.addr %s263, 62
        %s265 = scalar_lea.vmem [#allocation4], %s264
        // Predicated region
        $region33: #{sisdr_loss.1} parent=27 // pred_check
          %p266 = pneg %p89
        $region34: #{sisdr_loss.1} parent=27 // pred_check_branch
          %268 = sbr.rel (%p266) target = $region36
        $region35: #{sisdr_loss.1} parent=27 // pred_region
          %270 = dma.done %s262, 992
        $region36: #{sisdr_loss.1} parent=27 // pred_fallthru
          _
        %s271 = sand.u32 %s46, 1
        %s272 = scalar_lea.sflag [#allocation3], %s271
        %s273 = sand.u32 %s46, 1
        %s274 = smul.addr %s273, 62
        %s275 = scalar_lea.vmem [#allocation2], %s274
        %p276 = pneg %p59
        %p277 = pneg %p56
        %s278 = sand.u32 %s76, 1
        %s279 = scalar_lea.sflag [#allocation5], %s278
        %s280 = sand.u32 %s76, 1
        %s281 = smul.addr %s280, 62
        %s282 = scalar_lea.vmem [#allocation4], %s281
        %p283 = pneg %p89
        %p284 = pneg %p86
        %p285 = pneg %p115
        %p286 = pneg %p112
        %p287 = scmp.lt.s32.totalorder %s26, 0
        %s288 = scalar_select %p287, %s26, 0
        %s289 = smul.addr %s288, 2
        %s290 = scalar_lea.vmem %s2, %s289
        %p291 = pneg %p141
        %p292 = pneg %p138
        %p293 = scmp.lt.s32.totalorder %s26, 0
        %s294 = scalar_select %p293, %s26, 0
        %s295 = smul.addr %s294, 2
        %s296 = scalar_lea.vmem %s3, %s295
        %p297 = pneg %p167
        %p298 = pneg %p164
        %p299 = scmp.lt.s32.totalorder %s26, 0
        %s300 = scalar_select %p299, %s26, 0
        %s301 = smul.addr %s300, 2
        %s302 = scalar_lea.vmem %s4, %s301
        %s303 = smul.u32 %s26, 2
        %s304 = sadd.s32 %s303, %s27
        %s305 = smul.u32 31, %s304
        %s306 = ssub.s32 32, %s305
        %p307 = scmp.lt.s32.totalorder %s306, 31
        %s308 = scalar_select %p307, %s306, 31
        %s309 = smul.u32 2, %s308
        %s310 = smul.u32 %s26, 2
        %s311 = sadd.s32 %s310, %s27
        %s312 = smul.u32 31, %s311
        %s313 = ssub.s32 32, %s312
        %p314 = scmp.lt.s32.totalorder %s313, 31
        %s315 = scalar_select %p314, %s313, 31
        %s316 = smul.u32 2, %s315
        %p317 = scmp.lt.s32.totalorder %s26, 0
        %s318 = scalar_select %p317, %s26, 0
        %s319 = smul.addr %s318, 2
        %s320 = scalar_lea.vmem %s2, %s319
        %p321 = scmp.lt.s32.totalorder %s26, 0
        %s322 = scalar_select %p321, %s26, 0
        %s323 = smul.addr %s322, 2
        %s324 = scalar_lea.vmem %s3, %s323
        %p325 = scmp.lt.s32.totalorder %s26, 0
        %s326 = scalar_select %p325, %s26, 0
        %s327 = smul.addr %s326, 2
        %s328 = scalar_lea.vmem %s4, %s327
        %p329 = scmp.eq.s32.totalorder %s27, 0
        // Predicated region
        $region37: #{sisdr_loss.1} parent=27 // pred_check
          %p330 = pneg %p329
        $region38: #{sisdr_loss.1} parent=27 // pred_check_branch
          %332 = sbr.rel (%p330) target = $region40
        $region39: #{sisdr_loss.1} parent=27 // pred_region
          %vm333 = vcmask 1024
          %334 = vst.msk [vmem:[%s320] sm:$0x3] %vm333, 0.0
          %335 = vst.msk [vmem:[%s324] sm:$0x3] %vm333, 0.0
          %336 = vst.msk [vmem:[%s328] sm:$0x3] %vm333, 0.0
        $region40: #{sisdr_loss.1} parent=27 // pred_fallthru
          _
        %v337 = vld [vmem:[%s255] sm:$0xff]
        %v338 = vld [vmem:[%s255 + $0x8] sm:$0xff]
        %v339 = vld [vmem:[%s255 + $0x10] sm:$0xff]
        %v340 = vld [vmem:[%s255 + $0x18] sm:$0xff]
        %v341 = vld [vmem:[%s255 + $0x20] sm:$0xff]
        %v342 = vld [vmem:[%s255 + $0x28] sm:$0xff]
        %v343 = vld [vmem:[%s255 + $0x30] sm:$0xff]
        %v344 = vld [vmem:[%s255 + $0x38] sm:$0x3f]
        %v345 = vld [vmem:[%s265] sm:$0xff]
        %v346 = vld [vmem:[%s265 + $0x8] sm:$0xff]
        %v347 = vld [vmem:[%s265 + $0x10] sm:$0xff]
        %v348 = vld [vmem:[%s265 + $0x18] sm:$0xff]
        %v349 = vld [vmem:[%s265 + $0x20] sm:$0xff]
        %v350 = vld [vmem:[%s265 + $0x28] sm:$0xff]
        %v351 = vld [vmem:[%s265 + $0x30] sm:$0xff]
        %v352 = vld [vmem:[%s265 + $0x38] sm:$0x3f]
        %s353 = smul.u32 %s26, 2
        %s354 = sadd.s32 %s353, %s27
        %s355 = smul.u32 %s354, 3968
        %v356 = vlaneseq
        %v357 = vand.u32 %v356, 127
        %v358 = vadd.s32 %v357, 128
        %v359 = vadd.s32 %v357, 256
        %v360 = vadd.s32 %v357, 384
        %v361 = vadd.s32 %v357, 512
        %v362 = vadd.s32 %v357, 640
        %v363 = vadd.s32 %v357, 768
        %v364 = vadd.s32 %v357, 896
        %v365 = vadd.s32 %v357, 1024
        %v366 = vadd.s32 %v357, 1152
        %v367 = vadd.s32 %v357, 1280
        %v368 = vadd.s32 %v357, 1408
        %v369 = vadd.s32 %v357, 1536
        %v370 = vadd.s32 %v357, 1664
        %v371 = vadd.s32 %v357, 1792
        %v372 = vadd.s32 %v357, 1920
        %v373 = vadd.s32 %v357, 2048
        %v374 = vadd.s32 %v357, 2176
        %v375 = vadd.s32 %v357, 2304
        %v376 = vadd.s32 %v357, 2432
        %v377 = vadd.s32 %v357, 2560
        %v378 = vadd.s32 %v357, 2688
        %v379 = vadd.s32 %v357, 2816
        %v380 = vadd.s32 %v357, 2944
        %v381 = vadd.s32 %v357, 3072
        %v382 = vadd.s32 %v357, 3200
        %v383 = vadd.s32 %v357, 3328
        %v384 = vadd.s32 %v357, 3456
        %v385 = vadd.s32 %v357, 3584
        %v386 = vadd.s32 %v357, 3712
        %v387 = vadd.s32 %v357, 3840
        %v388 = vstv %s355
        %v389 = vadd.s32 %v357, %v388
        %v390 = vadd.s32 %v358, %v388
        %v391 = vadd.s32 %v359, %v388
        %v392 = vadd.s32 %v360, %v388
        %v393 = vadd.s32 %v361, %v388
        %v394 = vadd.s32 %v362, %v388
        %v395 = vadd.s32 %v363, %v388
        %v396 = vadd.s32 %v364, %v388
        %v397 = vadd.s32 %v365, %v388
        %v398 = vadd.s32 %v366, %v388
        %v399 = vadd.s32 %v367, %v388
        %v400 = vadd.s32 %v368, %v388
        %v401 = vadd.s32 %v369, %v388
        %v402 = vadd.s32 %v370, %v388
        %v403 = vadd.s32 %v371, %v388
        %v404 = vadd.s32 %v372, %v388
        %v405 = vadd.s32 %v373, %v388
        %v406 = vadd.s32 %v374, %v388
        %v407 = vadd.s32 %v375, %v388
        %v408 = vadd.s32 %v376, %v388
        %v409 = vadd.s32 %v377, %v388
        %v410 = vadd.s32 %v378, %v388
        %v411 = vadd.s32 %v379, %v388
        %v412 = vadd.s32 %v380, %v388
        %v413 = vadd.s32 %v381, %v388
        %v414 = vadd.s32 %v382, %v388
        %v415 = vadd.s32 %v383, %v388
        %v416 = vadd.s32 %v384, %v388
        %v417 = vadd.s32 %v385, %v388
        %v418 = vadd.s32 %v386, %v388
        %v419 = vadd.s32 %v387, %v388
        %vm420 = vcmp.lt.s32.totalorder %v389, 4000
        %vm421 = vcmp.lt.s32.totalorder %v390, 4000
        %vm422 = vcmp.lt.s32.totalorder %v391, 4000
        %vm423 = vcmp.lt.s32.totalorder %v392, 4000
        %vm424 = vcmp.lt.s32.totalorder %v393, 4000
        %vm425 = vcmp.lt.s32.totalorder %v394, 4000
        %vm426 = vcmp.lt.s32.totalorder %v395, 4000
        %vm427 = vcmp.lt.s32.totalorder %v396, 4000
        %vm428 = vcmp.lt.s32.totalorder %v397, 4000
        %vm429 = vcmp.lt.s32.totalorder %v398, 4000
        %vm430 = vcmp.lt.s32.totalorder %v399, 4000
        %vm431 = vcmp.lt.s32.totalorder %v400, 4000
        %vm432 = vcmp.lt.s32.totalorder %v401, 4000
        %vm433 = vcmp.lt.s32.totalorder %v402, 4000
        %vm434 = vcmp.lt.s32.totalorder %v403, 4000
        %vm435 = vcmp.lt.s32.totalorder %v404, 4000
        %vm436 = vcmp.lt.s32.totalorder %v405, 4000
        %vm437 = vcmp.lt.s32.totalorder %v406, 4000
        %vm438 = vcmp.lt.s32.totalorder %v407, 4000
        %vm439 = vcmp.lt.s32.totalorder %v408, 4000
        %vm440 = vcmp.lt.s32.totalorder %v409, 4000
        %vm441 = vcmp.lt.s32.totalorder %v410, 4000
        %vm442 = vcmp.lt.s32.totalorder %v411, 4000
        %vm443 = vcmp.lt.s32.totalorder %v412, 4000
        %vm444 = vcmp.lt.s32.totalorder %v413, 4000
        %vm445 = vcmp.lt.s32.totalorder %v414, 4000
        %vm446 = vcmp.lt.s32.totalorder %v415, 4000
        %vm447 = vcmp.lt.s32.totalorder %v416, 4000
        %vm448 = vcmp.lt.s32.totalorder %v417, 4000
        %vm449 = vcmp.lt.s32.totalorder %v418, 4000
        %vm450 = vcmp.lt.s32.totalorder %v419, 4000
        %459 = vst [vmem:[#allocation1] ss:$4 sm:$0xff] %v337
        %s460 = scalar_lea.vmem [#allocation1], 32
        %461 = vst [vmem:[%s460] ss:$4 sm:$0xff] %v338
        %v462 = vld.sshfl [vmem:[#allocation1] sm:$0xff pattern:$0x73625140]
        %v463 = vld.sshfl [vmem:[#allocation1 + $0x8] sm:$0xff pattern:$0x73625140]
        %v464 = vld.sshfl [vmem:[#allocation1 + $0x10] sm:$0xff pattern:$0x73625140]
        %v465 = vld.sshfl [vmem:[#allocation1 + $0x18] sm:$0xff pattern:$0x73625140]
        %v466 = vld.sshfl [vmem:[#allocation1 + $0x20] sm:$0xff pattern:$0x73625140]
        %v467 = vld.sshfl [vmem:[#allocation1 + $0x28] sm:$0xff pattern:$0x73625140]
        %v468 = vld.sshfl [vmem:[#allocation1 + $0x30] sm:$0xff pattern:$0x73625140]
        %v469 = vld.sshfl [vmem:[#allocation1 + $0x38] sm:$0xff pattern:$0x73625140]
        %470 = vst [vmem:[#allocation1] ss:$4 sm:$0xff] %v339
        %471 = vst [vmem:[%s460] ss:$4 sm:$0xff] %v340
        %v472 = vld.sshfl [vmem:[#allocation1] sm:$0xff pattern:$0x73625140]
        %v473 = vld.sshfl [vmem:[#allocation1 + $0x8] sm:$0xff pattern:$0x73625140]
        %v474 = vld.sshfl [vmem:[#allocation1 + $0x10] sm:$0xff pattern:$0x73625140]
        %v475 = vld.sshfl [vmem:[#allocation1 + $0x18] sm:$0xff pattern:$0x73625140]
        %v476 = vld.sshfl [vmem:[#allocation1 + $0x20] sm:$0xff pattern:$0x73625140]
        %v477 = vld.sshfl [vmem:[#allocation1 + $0x28] sm:$0xff pattern:$0x73625140]
        %v478 = vld.sshfl [vmem:[#allocation1 + $0x30] sm:$0xff pattern:$0x73625140]
        %v479 = vld.sshfl [vmem:[#allocation1 + $0x38] sm:$0xff pattern:$0x73625140]
        %480 = vst [vmem:[#allocation1] ss:$4 sm:$0xff] %v341
        %481 = vst [vmem:[%s460] ss:$4 sm:$0xff] %v342
        %v482 = vld.sshfl [vmem:[#allocation1] sm:$0xff pattern:$0x73625140]
        %v483 = vld.sshfl [vmem:[#allocation1 + $0x8] sm:$0xff pattern:$0x73625140]
        %v484 = vld.sshfl [vmem:[#allocation1 + $0x10] sm:$0xff pattern:$0x73625140]
        %v485 = vld.sshfl [vmem:[#allocation1 + $0x18] sm:$0xff pattern:$0x73625140]
        %v486 = vld.sshfl [vmem:[#allocation1 + $0x20] sm:$0xff pattern:$0x73625140]
        %v487 = vld.sshfl [vmem:[#allocation1 + $0x28] sm:$0xff pattern:$0x73625140]
        %v488 = vld.sshfl [vmem:[#allocation1 + $0x30] sm:$0xff pattern:$0x73625140]
        %v489 = vld.sshfl [vmem:[#allocation1 + $0x38] sm:$0xff pattern:$0x73625140]
        %490 = vst [vmem:[#allocation1] ss:$4 sm:$0xff] %v343
        %491 = vst [vmem:[%s460] ss:$4 sm:$0xff] %v344
        %v492 = vld.sshfl [vmem:[#allocation1] sm:$0xff pattern:$0x73625140]
        %v493 = vld.sshfl [vmem:[#allocation1 + $0x8] sm:$0xff pattern:$0x73625140]
        %v494 = vld.sshfl [vmem:[#allocation1 + $0x10] sm:$0xff pattern:$0x73625140]
        %v495 = vld.sshfl [vmem:[#allocation1 + $0x18] sm:$0xff pattern:$0x73625140]
        %v496 = vld.sshfl [vmem:[#allocation1 + $0x20] sm:$0xff pattern:$0x73625140]
        %v497 = vld.sshfl [vmem:[#allocation1 + $0x28] sm:$0xff pattern:$0x73625140]
        %v498 = vld.sshfl [vmem:[#allocation1 + $0x30] sm:$0xff pattern:$0x73625140]
        %v530 = vsel %vm420, %v462, 0.0
        %v531 = vsel %vm421, %v463, 0.0
        %v532 = vsel %vm422, %v464, 0.0
        %v533 = vsel %vm423, %v465, 0.0
        %v534 = vsel %vm424, %v466, 0.0
        %v535 = vsel %vm425, %v467, 0.0
        %v536 = vsel %vm426, %v468, 0.0
        %v537 = vsel %vm427, %v469, 0.0
        %v538 = vsel %vm428, %v472, 0.0
        %v539 = vsel %vm429, %v473, 0.0
        %v540 = vsel %vm430, %v474, 0.0
        %v541 = vsel %vm431, %v475, 0.0
        %v542 = vsel %vm432, %v476, 0.0
        %v543 = vsel %vm433, %v477, 0.0
        %v544 = vsel %vm434, %v478, 0.0
        %v545 = vsel %vm435, %v479, 0.0
        %v546 = vsel %vm436, %v482, 0.0
        %v547 = vsel %vm437, %v483, 0.0
        %v548 = vsel %vm438, %v484, 0.0
        %v549 = vsel %vm439, %v485, 0.0
        %v550 = vsel %vm440, %v486, 0.0
        %v551 = vsel %vm441, %v487, 0.0
        %v552 = vsel %vm442, %v488, 0.0
        %v553 = vsel %vm443, %v489, 0.0
        %v554 = vsel %vm444, %v492, 0.0
        %v555 = vsel %vm445, %v493, 0.0
        %v556 = vsel %vm446, %v494, 0.0
        %v557 = vsel %vm447, %v495, 0.0
        %v558 = vsel %vm448, %v496, 0.0
        %v559 = vsel %vm449, %v497, 0.0
        %v560 = vsel %vm450, %v498, 0.0
        %569 = vst [vmem:[#allocation1] ss:$4 sm:$0xff] %v345
        %s570 = scalar_lea.vmem [#allocation1], 32
        %571 = vst [vmem:[%s570] ss:$4 sm:$0xff] %v346
        %v572 = vld.sshfl [vmem:[#allocation1] sm:$0xff pattern:$0x73625140]
        %v573 = vld.sshfl [vmem:[#allocation1 + $0x8] sm:$0xff pattern:$0x73625140]
        %v574 = vld.sshfl [vmem:[#allocation1 + $0x10] sm:$0xff pattern:$0x73625140]
        %v575 = vld.sshfl [vmem:[#allocation1 + $0x18] sm:$0xff pattern:$0x73625140]
        %v576 = vld.sshfl [vmem:[#allocation1 + $0x20] sm:$0xff pattern:$0x73625140]
        %v577 = vld.sshfl [vmem:[#allocation1 + $0x28] sm:$0xff pattern:$0x73625140]
        %v578 = vld.sshfl [vmem:[#allocation1 + $0x30] sm:$0xff pattern:$0x73625140]
        %v579 = vld.sshfl [vmem:[#allocation1 + $0x38] sm:$0xff pattern:$0x73625140]
        %580 = vst [vmem:[#allocation1] ss:$4 sm:$0xff] %v347
        %581 = vst [vmem:[%s570] ss:$4 sm:$0xff] %v348
        %v582 = vld.sshfl [vmem:[#allocation1] sm:$0xff pattern:$0x73625140]
        %v583 = vld.sshfl [vmem:[#allocation1 + $0x8] sm:$0xff pattern:$0x73625140]
        %v584 = vld.sshfl [vmem:[#allocation1 + $0x10] sm:$0xff pattern:$0x73625140]
        %v585 = vld.sshfl [vmem:[#allocation1 + $0x18] sm:$0xff pattern:$0x73625140]
        %v586 = vld.sshfl [vmem:[#allocation1 + $0x20] sm:$0xff pattern:$0x73625140]
        %v587 = vld.sshfl [vmem:[#allocation1 + $0x28] sm:$0xff pattern:$0x73625140]
        %v588 = vld.sshfl [vmem:[#allocation1 + $0x30] sm:$0xff pattern:$0x73625140]
        %v589 = vld.sshfl [vmem:[#allocation1 + $0x38] sm:$0xff pattern:$0x73625140]
        %590 = vst [vmem:[#allocation1] ss:$4 sm:$0xff] %v349
        %591 = vst [vmem:[%s570] ss:$4 sm:$0xff] %v350
        %v592 = vld.sshfl [vmem:[#allocation1] sm:$0xff pattern:$0x73625140]
        %v593 = vld.sshfl [vmem:[#allocation1 + $0x8] sm:$0xff pattern:$0x73625140]
        %v594 = vld.sshfl [vmem:[#allocation1 + $0x10] sm:$0xff pattern:$0x73625140]
        %v595 = vld.sshfl [vmem:[#allocation1 + $0x18] sm:$0xff pattern:$0x73625140]
        %v596 = vld.sshfl [vmem:[#allocation1 + $0x20] sm:$0xff pattern:$0x73625140]
        %v597 = vld.sshfl [vmem:[#allocation1 + $0x28] sm:$0xff pattern:$0x73625140]
        %v598 = vld.sshfl [vmem:[#allocation1 + $0x30] sm:$0xff pattern:$0x73625140]
        %v599 = vld.sshfl [vmem:[#allocation1 + $0x38] sm:$0xff pattern:$0x73625140]
        %600 = vst [vmem:[#allocation1] ss:$4 sm:$0xff] %v351
        %601 = vst [vmem:[%s570] ss:$4 sm:$0xff] %v352
        %v602 = vld.sshfl [vmem:[#allocation1] sm:$0xff pattern:$0x73625140]
        %v603 = vld.sshfl [vmem:[#allocation1 + $0x8] sm:$0xff pattern:$0x73625140]
        %v604 = vld.sshfl [vmem:[#allocation1 + $0x10] sm:$0xff pattern:$0x73625140]
        %v605 = vld.sshfl [vmem:[#allocation1 + $0x18] sm:$0xff pattern:$0x73625140]
        %v606 = vld.sshfl [vmem:[#allocation1 + $0x20] sm:$0xff pattern:$0x73625140]
        %v607 = vld.sshfl [vmem:[#allocation1 + $0x28] sm:$0xff pattern:$0x73625140]
        %v608 = vld.sshfl [vmem:[#allocation1 + $0x30] sm:$0xff pattern:$0x73625140]
        %v640 = vsel %vm420, %v572, 0.0
        %v641 = vsel %vm421, %v573, 0.0
        %v642 = vsel %vm422, %v574, 0.0
        %v643 = vsel %vm423, %v575, 0.0
        %v644 = vsel %vm424, %v576, 0.0
        %v645 = vsel %vm425, %v577, 0.0
        %v646 = vsel %vm426, %v578, 0.0
        %v647 = vsel %vm427, %v579, 0.0
        %v648 = vsel %vm428, %v582, 0.0
        %v649 = vsel %vm429, %v583, 0.0
        %v650 = vsel %vm430, %v584, 0.0
        %v651 = vsel %vm431, %v585, 0.0
        %v652 = vsel %vm432, %v586, 0.0
        %v653 = vsel %vm433, %v587, 0.0
        %v654 = vsel %vm434, %v588, 0.0
        %v655 = vsel %vm435, %v589, 0.0
        %v656 = vsel %vm436, %v592, 0.0
        %v657 = vsel %vm437, %v593, 0.0
        %v658 = vsel %vm438, %v594, 0.0
        %v659 = vsel %vm439, %v595, 0.0
        %v660 = vsel %vm440, %v596, 0.0
        %v661 = vsel %vm441, %v597, 0.0
        %v662 = vsel %vm442, %v598, 0.0
        %v663 = vsel %vm443, %v599, 0.0
        %v664 = vsel %vm444, %v602, 0.0
        %v665 = vsel %vm445, %v603, 0.0
        %v666 = vsel %vm446, %v604, 0.0
        %v667 = vsel %vm447, %v605, 0.0
        %v668 = vsel %vm448, %v606, 0.0
        %v669 = vsel %vm449, %v607, 0.0
        %v670 = vsel %vm450, %v608, 0.0
        %v671 = vld [vmem:[%s320] sm:$0x3]
        %v672 = vmul.f32 %v530, %v640
        %v673 = vmul.f32 %v531, %v641
        %v674 = vmul.f32 %v532, %v642
        %v675 = vmul.f32 %v533, %v643
        %v676 = vmul.f32 %v534, %v644
        %v677 = vmul.f32 %v535, %v645
        %v678 = vmul.f32 %v536, %v646
        %v679 = vmul.f32 %v537, %v647
        %v680 = vmul.f32 %v538, %v648
        %v681 = vmul.f32 %v539, %v649
        %v682 = vmul.f32 %v540, %v650
        %v683 = vmul.f32 %v541, %v651
        %v684 = vmul.f32 %v542, %v652
        %v685 = vmul.f32 %v543, %v653
        %v686 = vmul.f32 %v544, %v654
        %v687 = vmul.f32 %v545, %v655
        %v688 = vmul.f32 %v546, %v656
        %v689 = vmul.f32 %v547, %v657
        %v690 = vmul.f32 %v548, %v658
        %v691 = vmul.f32 %v549, %v659
        %v692 = vmul.f32 %v550, %v660
        %v693 = vmul.f32 %v551, %v661
        %v694 = vmul.f32 %v552, %v662
        %v695 = vmul.f32 %v553, %v663
        %v696 = vmul.f32 %v554, %v664
        %v697 = vmul.f32 %v555, %v665
        %v698 = vmul.f32 %v556, %v666
        %v699 = vmul.f32 %v557, %v667
        %v700 = vmul.f32 %v558, %v668
        %v701 = vmul.f32 %v559, %v669
        %v702 = vmul.f32 %v560, %v670
        %vm703 = vcmask 1041408
        %v704 = vsel %vm703, %v672, 0.0
        %v705 = vsel %vm703, %v673, 0.0
        %v706 = vadd.f32 %v704, %v705
        %v707 = vsel %vm703, %v674, 0.0
        %v708 = vadd.f32 %v706, %v707
        %v709 = vsel %vm703, %v675, 0.0
        %v710 = vadd.f32 %v708, %v709
        %v711 = vsel %vm703, %v676, 0.0
        %v712 = vadd.f32 %v710, %v711
        %v713 = vsel %vm703, %v677, 0.0
        %v714 = vadd.f32 %v712, %v713
        %v715 = vsel %vm703, %v678, 0.0
        %v716 = vadd.f32 %v714, %v715
        %v717 = vsel %vm703, %v679, 0.0
        %v718 = vadd.f32 %v716, %v717
        %v719 = vsel %vm703, %v680, 0.0
        %v720 = vadd.f32 %v718, %v719
        %v721 = vsel %vm703, %v681, 0.0
        %v722 = vadd.f32 %v720, %v721
        %v723 = vsel %vm703, %v682, 0.0
        %v724 = vadd.f32 %v722, %v723
        %v725 = vsel %vm703, %v683, 0.0
        %v726 = vadd.f32 %v724, %v725
        %v727 = vsel %vm703, %v684, 0.0
        %v728 = vadd.f32 %v726, %v727
        %v729 = vsel %vm703, %v685, 0.0
        %v730 = vadd.f32 %v728, %v729
        %v731 = vsel %vm703, %v686, 0.0
        %v732 = vadd.f32 %v730, %v731
        %v733 = vsel %vm703, %v687, 0.0
        %v734 = vadd.f32 %v732, %v733
        %v735 = vsel %vm703, %v688, 0.0
        %v736 = vadd.f32 %v734, %v735
        %v737 = vsel %vm703, %v689, 0.0
        %v738 = vadd.f32 %v736, %v737
        %v739 = vsel %vm703, %v690, 0.0
        %v740 = vadd.f32 %v738, %v739
        %v741 = vsel %vm703, %v691, 0.0
        %v742 = vadd.f32 %v740, %v741
        %v743 = vsel %vm703, %v692, 0.0
        %v744 = vadd.f32 %v742, %v743
        %v745 = vsel %vm703, %v693, 0.0
        %v746 = vadd.f32 %v744, %v745
        %v747 = vsel %vm703, %v694, 0.0
        %v748 = vadd.f32 %v746, %v747
        %v749 = vsel %vm703, %v695, 0.0
        %v750 = vadd.f32 %v748, %v749
        %v751 = vsel %vm703, %v696, 0.0
        %v752 = vadd.f32 %v750, %v751
        %v753 = vsel %vm703, %v697, 0.0
        %v754 = vadd.f32 %v752, %v753
        %v755 = vsel %vm703, %v698, 0.0
        %v756 = vadd.f32 %v754, %v755
        %v757 = vsel %vm703, %v699, 0.0
        %v758 = vadd.f32 %v756, %v757
        %v759 = vsel %vm703, %v700, 0.0
        %v760 = vadd.f32 %v758, %v759
        %v761 = vsel %vm703, %v701, 0.0
        %v762 = vadd.f32 %v760, %v761
        %v763 = vsel %vm703, %v702, 0.0
        %v764 = vadd.f32 %v762, %v763
        %765 = vadd.xlane.f32.xlu0 %v764
        %v766 = vpop.xlane.xlu0 %765
        %v767 = vadd.f32 %v671, %v766
        %vm768 = vcmask 1024
        %769 = vst.msk [vmem:[%s320] sm:$0x3] %vm768, %v767
        %v770 = vld [vmem:[%s324] sm:$0x3]
        %v771 = vmul.f32 %v530, %v530
        %v772 = vmul.f32 %v531, %v531
        %v773 = vmul.f32 %v532, %v532
        %v774 = vmul.f32 %v533, %v533
        %v775 = vmul.f32 %v534, %v534
        %v776 = vmul.f32 %v535, %v535
        %v777 = vmul.f32 %v536, %v536
        %v778 = vmul.f32 %v537, %v537
        %v779 = vmul.f32 %v538, %v538
        %v780 = vmul.f32 %v539, %v539
        %v781 = vmul.f32 %v540, %v540
        %v782 = vmul.f32 %v541, %v541
        %v783 = vmul.f32 %v542, %v542
        %v784 = vmul.f32 %v543, %v543
        %v785 = vmul.f32 %v544, %v544
        %v786 = vmul.f32 %v545, %v545
        %v787 = vmul.f32 %v546, %v546
        %v788 = vmul.f32 %v547, %v547
        %v789 = vmul.f32 %v548, %v548
        %v790 = vmul.f32 %v549, %v549
        %v791 = vmul.f32 %v550, %v550
        %v792 = vmul.f32 %v551, %v551
        %v793 = vmul.f32 %v552, %v552
        %v794 = vmul.f32 %v553, %v553
        %v795 = vmul.f32 %v554, %v554
        %v796 = vmul.f32 %v555, %v555
        %v797 = vmul.f32 %v556, %v556
        %v798 = vmul.f32 %v557, %v557
        %v799 = vmul.f32 %v558, %v558
        %v800 = vmul.f32 %v559, %v559
        %v801 = vmul.f32 %v560, %v560
        %v802 = vsel %vm703, %v771, 0.0
        %v803 = vsel %vm703, %v772, 0.0
        %v804 = vadd.f32 %v802, %v803
        %v805 = vsel %vm703, %v773, 0.0
        %v806 = vadd.f32 %v804, %v805
        %v807 = vsel %vm703, %v774, 0.0
        %v808 = vadd.f32 %v806, %v807
        %v809 = vsel %vm703, %v775, 0.0
        %v810 = vadd.f32 %v808, %v809
        %v811 = vsel %vm703, %v776, 0.0
        %v812 = vadd.f32 %v810, %v811
        %v813 = vsel %vm703, %v777, 0.0
        %v814 = vadd.f32 %v812, %v813
        %v815 = vsel %vm703, %v778, 0.0
        %v816 = vadd.f32 %v814, %v815
        %v817 = vsel %vm703, %v779, 0.0
        %v818 = vadd.f32 %v816, %v817
        %v819 = vsel %vm703, %v780, 0.0
        %v820 = vadd.f32 %v818, %v819
        %v821 = vsel %vm703, %v781, 0.0
        %v822 = vadd.f32 %v820, %v821
        %v823 = vsel %vm703, %v782, 0.0
        %v824 = vadd.f32 %v822, %v823
        %v825 = vsel %vm703, %v783, 0.0
        %v826 = vadd.f32 %v824, %v825
        %v827 = vsel %vm703, %v784, 0.0
        %v828 = vadd.f32 %v826, %v827
        %v829 = vsel %vm703, %v785, 0.0
        %v830 = vadd.f32 %v828, %v829
        %v831 = vsel %vm703, %v786, 0.0
        %v832 = vadd.f32 %v830, %v831
        %v833 = vsel %vm703, %v787, 0.0
        %v834 = vadd.f32 %v832, %v833
        %v835 = vsel %vm703, %v788, 0.0
        %v836 = vadd.f32 %v834, %v835
        %v837 = vsel %vm703, %v789, 0.0
        %v838 = vadd.f32 %v836, %v837
        %v839 = vsel %vm703, %v790, 0.0
        %v840 = vadd.f32 %v838, %v839
        %v841 = vsel %vm703, %v791, 0.0
        %v842 = vadd.f32 %v840, %v841
        %v843 = vsel %vm703, %v792, 0.0
        %v844 = vadd.f32 %v842, %v843
        %v845 = vsel %vm703, %v793, 0.0
        %v846 = vadd.f32 %v844, %v845
        %v847 = vsel %vm703, %v794, 0.0
        %v848 = vadd.f32 %v846, %v847
        %v849 = vsel %vm703, %v795, 0.0
        %v850 = vadd.f32 %v848, %v849
        %v851 = vsel %vm703, %v796, 0.0
        %v852 = vadd.f32 %v850, %v851
        %v853 = vsel %vm703, %v797, 0.0
        %v854 = vadd.f32 %v852, %v853
        %v855 = vsel %vm703, %v798, 0.0
        %v856 = vadd.f32 %v854, %v855
        %v857 = vsel %vm703, %v799, 0.0
        %v858 = vadd.f32 %v856, %v857
        %v859 = vsel %vm703, %v800, 0.0
        %v860 = vadd.f32 %v858, %v859
        %v861 = vsel %vm703, %v801, 0.0
        %v862 = vadd.f32 %v860, %v861
        %863 = vadd.xlane.f32.xlu0 %v862
        %v864 = vpop.xlane.xlu0 %863
        %v865 = vadd.f32 %v770, %v864
        %866 = vst.msk [vmem:[%s324] sm:$0x3] %vm768, %v865
        %v867 = vld [vmem:[%s328] sm:$0x3]
        %v868 = vmul.f32 %v640, %v640
        %v869 = vmul.f32 %v641, %v641
        %v870 = vmul.f32 %v642, %v642
        %v871 = vmul.f32 %v643, %v643
        %v872 = vmul.f32 %v644, %v644
        %v873 = vmul.f32 %v645, %v645
        %v874 = vmul.f32 %v646, %v646
        %v875 = vmul.f32 %v647, %v647
        %v876 = vmul.f32 %v648, %v648
        %v877 = vmul.f32 %v649, %v649
        %v878 = vmul.f32 %v650, %v650
        %v879 = vmul.f32 %v651, %v651
        %v880 = vmul.f32 %v652, %v652
        %v881 = vmul.f32 %v653, %v653
        %v882 = vmul.f32 %v654, %v654
        %v883 = vmul.f32 %v655, %v655
        %v884 = vmul.f32 %v656, %v656
        %v885 = vmul.f32 %v657, %v657
        %v886 = vmul.f32 %v658, %v658
        %v887 = vmul.f32 %v659, %v659
        %v888 = vmul.f32 %v660, %v660
        %v889 = vmul.f32 %v661, %v661
        %v890 = vmul.f32 %v662, %v662
        %v891 = vmul.f32 %v663, %v663
        %v892 = vmul.f32 %v664, %v664
        %v893 = vmul.f32 %v665, %v665
        %v894 = vmul.f32 %v666, %v666
        %v895 = vmul.f32 %v667, %v667
        %v896 = vmul.f32 %v668, %v668
        %v897 = vmul.f32 %v669, %v669
        %v898 = vmul.f32 %v670, %v670
        %v899 = vsel %vm703, %v868, 0.0
        %v900 = vsel %vm703, %v869, 0.0
        %v901 = vadd.f32 %v899, %v900
        %v902 = vsel %vm703, %v870, 0.0
        %v903 = vadd.f32 %v901, %v902
        %v904 = vsel %vm703, %v871, 0.0
        %v905 = vadd.f32 %v903, %v904
        %v906 = vsel %vm703, %v872, 0.0
        %v907 = vadd.f32 %v905, %v906
        %v908 = vsel %vm703, %v873, 0.0
        %v909 = vadd.f32 %v907, %v908
        %v910 = vsel %vm703, %v874, 0.0
        %v911 = vadd.f32 %v909, %v910
        %v912 = vsel %vm703, %v875, 0.0
        %v913 = vadd.f32 %v911, %v912
        %v914 = vsel %vm703, %v876, 0.0
        %v915 = vadd.f32 %v913, %v914
        %v916 = vsel %vm703, %v877, 0.0
        %v917 = vadd.f32 %v915, %v916
        %v918 = vsel %vm703, %v878, 0.0
        %v919 = vadd.f32 %v917, %v918
        %v920 = vsel %vm703, %v879, 0.0
        %v921 = vadd.f32 %v919, %v920
        %v922 = vsel %vm703, %v880, 0.0
        %v923 = vadd.f32 %v921, %v922
        %v924 = vsel %vm703, %v881, 0.0
        %v925 = vadd.f32 %v923, %v924
        %v926 = vsel %vm703, %v882, 0.0
        %v927 = vadd.f32 %v925, %v926
        %v928 = vsel %vm703, %v883, 0.0
        %v929 = vadd.f32 %v927, %v928
        %v930 = vsel %vm703, %v884, 0.0
        %v931 = vadd.f32 %v929, %v930
        %v932 = vsel %vm703, %v885, 0.0
        %v933 = vadd.f32 %v931, %v932
        %v934 = vsel %vm703, %v886, 0.0
        %v935 = vadd.f32 %v933, %v934
        %v936 = vsel %vm703, %v887, 0.0
        %v937 = vadd.f32 %v935, %v936
        %v938 = vsel %vm703, %v888, 0.0
        %v939 = vadd.f32 %v937, %v938
        %v940 = vsel %vm703, %v889, 0.0
        %v941 = vadd.f32 %v939, %v940
        %v942 = vsel %vm703, %v890, 0.0
        %v943 = vadd.f32 %v941, %v942
        %v944 = vsel %vm703, %v891, 0.0
        %v945 = vadd.f32 %v943, %v944
        %v946 = vsel %vm703, %v892, 0.0
        %v947 = vadd.f32 %v945, %v946
        %v948 = vsel %vm703, %v893, 0.0
        %v949 = vadd.f32 %v947, %v948
        %v950 = vsel %vm703, %v894, 0.0
        %v951 = vadd.f32 %v949, %v950
        %v952 = vsel %vm703, %v895, 0.0
        %v953 = vadd.f32 %v951, %v952
        %v954 = vsel %vm703, %v896, 0.0
        %v955 = vadd.f32 %v953, %v954
        %v956 = vsel %vm703, %v897, 0.0
        %v957 = vadd.f32 %v955, %v956
        %v958 = vsel %vm703, %v898, 0.0
        %v959 = vadd.f32 %v957, %v958
        %960 = vadd.xlane.f32.xlu0 %v959
        %v961 = vpop.xlane.xlu0 %960
        %v962 = vadd.f32 %v867, %v961
        %963 = vst.msk [vmem:[%s328] sm:$0x3] %vm768, %v962
        %p964 = scmp.lt.s32.totalorder %s26, 0
        %s965 = scalar_select %p964, %s26, 0
        %s966 = smul.addr %s965, 2
        %s967 = scalar_lea.vmem %s2, %s966
        %p968 = scmp.lt.s32.totalorder %s26, 0
        %s969 = scalar_select %p968, %s26, 0
        %s970 = smul.addr %s969, 2
        %s971 = scalar_lea.vmem %s3, %s970
        %p972 = scmp.lt.s32.totalorder %s26, 0
        %s973 = scalar_select %p972, %s26, 0
        %s974 = smul.addr %s973, 2
        %s975 = scalar_lea.vmem %s4, %s974
        // Predicated region
        $region41: #{sisdr_loss.1} parent=27 // pred_check
          %p976 = pneg %p112
        $region42: #{sisdr_loss.1} parent=27 // pred_check_branch
          %978 = sbr.rel (%p976) target = $region44
        $region43: #{sisdr_loss.1} parent=27 // pred_region
          _
        $region44: #{sisdr_loss.1} parent=27 // pred_fallthru
          _
        // Predicated region
        $region45: #{sisdr_loss.1} parent=27 // pred_check
          %p979 = pneg %p138
        $region46: #{sisdr_loss.1} parent=27 // pred_check_branch
          %981 = sbr.rel (%p979) target = $region48
        $region47: #{sisdr_loss.1} parent=27 // pred_region
          _
        $region48: #{sisdr_loss.1} parent=27 // pred_fallthru
          _
        // Predicated region
        $region49: #{sisdr_loss.1} parent=27 // pred_check
          %p982 = pneg %p164
        $region50: #{sisdr_loss.1} parent=27 // pred_check_branch
          %984 = sbr.rel (%p982) target = $region52
        $region51: #{sisdr_loss.1} parent=27 // pred_region
          _
        $region52: #{sisdr_loss.1} parent=27 // pred_fallthru
          _
        // Predicated region
        $region53: #{sisdr_loss.1} parent=27 // pred_check
          %p985 = pneg %p112
        $region54: #{sisdr_loss.1} parent=27 // pred_check_branch
          %987 = sbr.rel (%p985) target = $region56
        $region55: #{sisdr_loss.1} parent=27 // pred_region
          %p988 = scmp.lt.s32.totalorder %s26, 0
          %s989 = scalar_select %p988, %s26, 0
          %s990 = smul.addr %s989, 2
          %s991 = scalar_lea.vmem %s2, %s990
        $region56: #{sisdr_loss.1} parent=27 // pred_fallthru
          _
        // Predicated region
        $region57: #{sisdr_loss.1} parent=27 // pred_check
          %p992 = pneg %p138
        $region58: #{sisdr_loss.1} parent=27 // pred_check_branch
          %994 = sbr.rel (%p992) target = $region60
        $region59: #{sisdr_loss.1} parent=27 // pred_region
          %p995 = scmp.lt.s32.totalorder %s26, 0
          %s996 = scalar_select %p995, %s26, 0
          %s997 = smul.addr %s996, 2
          %s998 = scalar_lea.vmem %s3, %s997
        $region60: #{sisdr_loss.1} parent=27 // pred_fallthru
          _
        // Predicated region
        $region61: #{sisdr_loss.1} parent=27 // pred_check
          %p999 = pneg %p164
        $region62: #{sisdr_loss.1} parent=27 // pred_check_branch
          %1001 = sbr.rel (%p999) target = $region64
        $region63: #{sisdr_loss.1} parent=27 // pred_region
          %p1002 = scmp.lt.s32.totalorder %s26, 0
          %s1003 = scalar_select %p1002, %s26, 0
          %s1004 = smul.addr %s1003, 2
          %s1005 = scalar_lea.vmem %s4, %s1004
        $region64: #{sisdr_loss.1} parent=27 // pred_fallthru
          _
      $region28: #{sisdr_loss.1} parent=5 // pred_fallthru
        _
      %p1006 = scmp.le.s32.totalorder 2, %s17
      // Predicated region
      $region65: #{sisdr_loss.1} parent=5 // pred_check
        %p1007 = pneg %p1006
      $region66: #{sisdr_loss.1} parent=5 // pred_check_branch
        %1009 = sbr.rel (%p1007) target = $region68
      $region67: #{sisdr_loss.1} parent=5 // pred_region
        %s1010 = ssub.s32 %s17, 2
      $region68: #{sisdr_loss.1} parent=5 // pred_fallthru
        _
    $region6: #{sisdr_loss.1} parent=1 // loop_footer
      %s21 = sadd.s32 1, %s17
    $region7: #{sisdr_loss.1} parent=1 // loop_footer_branch
      %16 = sbr.rel target = $region3
    $region8: #{sisdr_loss.1} parent=1 // loop_exit
      _
    %1011 = vsyncpa [#allocation3], 1
    %s1012 = scalar_lea.sflag [#allocation3], 1
    %1013 = vsyncpa %s1012, 1
    %1014 = vsyncpa [#allocation5], 1
    %s1015 = scalar_lea.sflag [#allocation5], 1
    %1016 = vsyncpa %s1015, 1

</llo_original>
